<compile_context>
chip_gen: v7x
topology: tpu7x:2x2x1
jax: 0.10.0
libtpu: 0.0.40
codegen_flags: <defaults>
</compile_context>

<pallas_src>
import numpy as np
import jax
import jax.numpy as jnp
from jax import lax
from jax.experimental import pallas as pl
from jax.experimental.pallas import tpu as pltpu

N_QUBITS = 8
N_LAYERS = 2
SEL_DEPTH = 1                       # depth L of each StronglyEntanglingLayers block
DIM = 2 ** N_QUBITS                 # 256 amplitudes
G_TOTAL = 1 + N_LAYERS * SEL_DEPTH  # AngleEmbedding + one fused gate per entangling layer


# ---------- static host-side index math: CNOT-ring permutations (no matmuls) ----------
def _cnot_ring_inv_perm(r):
    """inv such that (P_ring @ U)[i, :] = U[inv[i], :], for CNOT(w, (w+r)%n), w=0..n-1."""
    idx = np.arange(DIM)
    for w in range(N_QUBITS):
        c_bit = (idx >> (N_QUBITS - 1 - w)) & 1
        tgt = (w + r) % N_QUBITS
        idx = idx ^ (c_bit << (N_QUBITS - 1 - tgt))
    inv = np.empty(DIM, dtype=np.int32)
    inv[idx] = np.arange(DIM, dtype=np.int32)
    return inv


_CNOT_INV = {r: _cnot_ring_inv_perm(r) for r in range(1, N_QUBITS)}


# ---------------- traced (on-device) fused-gate construction ----------------
def _kron8(mats):
    """kron over all wires of per-wire 2x2 matrices, wire 0 = leftmost (MSB)."""
    U = mats[0]
    for w in range(1, N_QUBITS):
        U = jnp.kron(U, mats[w])
    return U


def _build_gate_stack(inputs, hidden):
    """(G, 256, 512) f32 stack [Re(U^T) | Im(U^T)] of fused unitaries in circuit order."""
    inputs = inputs.astype(jnp.float32)
    hidden = hidden.astype(jnp.float32)

    # gate 0: AngleEmbedding(inputs) -> kron of per-wire RX
    half = 0.5 * inputs
    c, s = jnp.cos(half), jnp.sin(half)
    z = jnp.zeros_like(c)
    rx_re = jnp.stack([jnp.stack([c, z], -1), jnp.stack([z, c], -1)], -2)     # (8,2,2)
    rx_im = jnp.stack([jnp.stack([z, -s], -1), jnp.stack([-s, z], -1)], -2)   # (8,2,2)
    gates = [_kron8(lax.complex(rx_re, rx_im))]

    # one fused gate per StronglyEntanglingLayers depth:
    # kron of per-wire Rot, then the CNOT ring folded in as a static row gather.
    for i in range(N_LAYERS):
        for l in range(SEL_DEPTH):
            phi = hidden[i, l, :, 0]
            theta = hidden[i, l, :, 1]
            omega = hidden[i, l, :, 2]
            ct, st_ = jnp.cos(0.5 * theta), jnp.sin(0.5 * theta)
            a = 0.5 * (phi + omega)
            b = 0.5 * (phi - omega)
            m00 = lax.complex(jnp.cos(a), -jnp.sin(a)) * ct
            m01 = -lax.complex(jnp.cos(b), jnp.sin(b)) * st_
            m10 = lax.complex(jnp.cos(b), -jnp.sin(b)) * st_
            m11 = lax.complex(jnp.cos(a), jnp.sin(a)) * ct
            rot = jnp.stack([jnp.stack([m00, m01], -1),
                             jnp.stack([m10, m11], -1)], -2)                  # (8,2,2)
            u = _kron8(rot)                                                   # (256,256)
            r = (l % (N_QUBITS - 1)) + 1          # PennyLane default `ranges`
            gates.append(u[_CNOT_INV[r]])         # fuse CNOT ring: P @ U_rot

    stack = jnp.stack(gates)                      # (G, 256, 256) complex64
    ut = jnp.swapaxes(stack, -1, -2)              # transposed: kernel does psi_row @ U^T
    return jnp.concatenate([jnp.real(ut), jnp.imag(ut)], axis=-1)  # (G, 256, 512) f32


# -------------------------------- Pallas kernel --------------------------------
def _qlstm_kernel(gates_ref, out_ref):
    # state: rows 0..7 = Re(psi) (8 redundant sublane copies), rows 8..15 = Im(psi)
    col = lax.broadcasted_iota(jnp.int32, (2 * N_QUBITS, DIM), 1)
    row = lax.broadcasted_iota(jnp.int32, (2 * N_QUBITS, DIM), 0)
    state = jnp.where((col == 0) & (row < N_QUBITS),
                      jnp.float32(1.0), jnp.float32(0.0))          # |0...0>

    # straight-line gate loop; each gate = ONE (16,256)@(256,512) MXU dot
    for g in range(G_TOTAL):
        rhs = gates_ref[g]                                          # (256, 512) = [Ur^T | Ui^T]
        t = jnp.dot(state, rhs, preferred_element_type=jnp.float32)  # (16, 512)
        nr = t[:N_QUBITS, :DIM] - t[N_QUBITS:, DIM:]                # Re(psi @ U^T)
        ni = t[:N_QUBITS, DIM:] + t[N_QUBITS:, :DIM]                # Im(psi @ U^T)
        state = jnp.concatenate([nr, ni], axis=0)

    nr, ni = state[:N_QUBITS], state[N_QUBITS:]
    probs = nr * nr + ni * ni                                       # (8, 256)
    # PauliZ sign table built in-register (wire 0 = MSB): z[w, s] = 1 - 2*bit_w(s)
    wrow = lax.broadcasted_iota(jnp.int32, (N_QUBITS, DIM), 0)
    scol = lax.broadcasted_iota(jnp.int32, (N_QUBITS, DIM), 1)
    zsign = (1 - 2 * ((scol >> (N_QUBITS - 1 - wrow)) & 1)).astype(jnp.float32)
    ev = jnp.sum(probs * zsign, axis=-1, keepdims=True)             # (8, 1) expvals (VPU+XLU)
    out_ref[...] = jnp.broadcast_to(jnp.tanh(ev), (N_QUBITS, 128))  # lane-dense slab


_qlstm_call = pl.pallas_call(
    _qlstm_kernel,
    out_shape=jax.ShapeDtypeStruct((N_QUBITS, 128), jnp.float32),
    grid=(1,),
    in_specs=[pl.BlockSpec((G_TOTAL, DIM, 2 * DIM), lambda i: (0, 0, 0))],
    out_specs=pl.BlockSpec((N_QUBITS, 128), lambda i: (0, 0)),
    compiler_params=pltpu.CompilerParams(dimension_semantics=("arbitrary",)),
)


@jax.jit
def quantum_lstm_cell_forward(inputs, hidden):
    """Forward pass: returns (hidden_out, hidden_out), each shape (n_qubits,)."""
    rhs = _build_gate_stack(inputs, hidden)       # on-device, fused into the same jit
    out = _qlstm_call(rhs)                        # (8, 128)
    hidden_out = out[:, 0]                        # all lanes identical; take lane 0
    # TODO(synk): for v7x, add a leading "parallel" batch grid axis over independent
    # cell evaluations so the second TensorCore is used; forward() here is single-cell.
    return hidden_out, hidden_out


# ------------------------------- numpy reference -------------------------------
I2 = np.eye(2, dtype=np.complex128)
X = np.array([[0, 1], [1, 0]], dtype=np.complex128)
P0 = np.diag([1.0, 0.0]).astype(np.complex128)
P1 = np.diag([0.0, 1.0]).astype(np.complex128)


def _rx_np(a):
    c, s = np.cos(a / 2), np.sin(a / 2)
    return np.array([[c, -1j * s], [-1j * s, c]], dtype=np.complex128)


def _rot_np(phi, theta, omega):   # qml.Rot = RZ(omega) RY(theta) RZ(phi)
    c, s = np.cos(theta / 2), np.sin(theta / 2)
    return np.array(
        [[np.exp(-0.5j * (phi + omega)) * c, -np.exp(0.5j * (phi - omega)) * s],
         [np.exp(-0.5j * (phi - omega)) * s, np.exp(0.5j * (phi + omega)) * c]],
        dtype=np.complex128)


def _embed_np(factors):
    U = np.eye(1, dtype=np.complex128)
    for w in range(N_QUBITS):
        U = np.kron(U, factors.get(w, I2))
    return U


def _cnot_np(ctrl, tgt):
    return _embed_np({ctrl: P0}) + _embed_np({ctrl: P1, tgt: X})


def _reference(inputs, hidden):
    """Unfused, gate-by-gate float64 reference (independently validates all fusion)."""
    inputs = np.asarray(inputs, dtype=np.float64)
    hidden = np.asarray(hidden, dtype=np.float64)
    psi = np.zeros(DIM, dtype=np.complex128)
    psi[0] = 1.0
    for w in range(N_QUBITS):                        # AngleEmbedding (RX)
        psi = _embed_np({w: _rx_np(inputs[w])}) @ psi
    for i in range(N_LAYERS):                        # StronglyEntanglingLayers
        weights = hidden[i]
        for l in range(weights.shape[0]):
            for w in range(N_QUBITS):
                psi = _embed_np({w: _rot_np(*weights[l, w])}) @ psi
            r = (l % (N_QUBITS - 1)) + 1
            for w in range(N_QUBITS):
                psi = _cnot_np(w, (w + r) % N_QUBITS) @ psi
    probs = np.abs(psi) ** 2
    s_idx = np.arange(DIM)[:, None]
    w_idx = np.arange(N_QUBITS)[None, :]
    zsign = 1.0 - 2.0 * ((s_idx >> (N_QUBITS - 1 - w_idx)) & 1)
    h = np.tanh(probs @ zsign)
    return h, h


if __name__ == "__main__":
    key = jax.random.PRNGKey(0)
    k_theta, k_in, k_hid = jax.random.split(key, 3)

    # nn.Parameter(0.01 * torch.randn(n_layers, n_qubits, 3))
    # TODO(synk): `theta` is declared in __init__ but never used in forward().
    theta = 0.01 * jax.random.normal(k_theta, (N_LAYERS, N_QUBITS, 3), dtype=jnp.float32)

    inputs = jax.random.normal(k_in, (N_QUBITS,), dtype=jnp.float32)
    hidden = 0.01 * jax.random.normal(k_hid, (N_LAYERS, SEL_DEPTH, N_QUBITS, 3),
                                      dtype=jnp.float32)

    h_out, c_out = quantum_lstm_cell_forward(inputs, hidden)
    jax.block_until_ready(h_out)

    ref_h, _ = _reference(inputs, hidden)
    np.testing.assert_allclose(np.asarray(h_out), ref_h, atol=2e-4, rtol=2e-4)
    print("KERNEL_OK")
</pallas_src>

<mosaic_0001>
module attributes {stable_mosaic.version = 11 : i64} {
  func.func @_qlstm_kernel(%arg0: i32, %arg1: memref<3x256x512xf32, #tpu.memory_space<vmem>>, %arg2: memref<8x128xf32, #tpu.memory_space<vmem>>) attributes {dimension_semantics = [#tpu.dimension_semantics<arbitrary>], iteration_bounds = array<i64: 1>, scalar_prefetch = 0 : i64, scratch_operands = 0 : i64, tpu.core_type = #tpu.core_type<tc>, window_params = [{pipeline_mode = #tpu.pipeline_mode<synchronous>, transform_indices = @transform_0, window_bounds = array<i64: 3, 256, 512>}, {pipeline_mode = #tpu.pipeline_mode<synchronous>, transform_indices = @transform_1, window_bounds = array<i64: 8, 128>}]} {
    %0 = tpu.iota {dimensions = array<i32: 1>} : vector<16x256xi32>
    %1 = tpu.iota {dimensions = array<i32: 0>} : vector<16x256xi32>
    %c0_i32 = arith.constant 0 : i32
    %2 = vector.broadcast %c0_i32 : i32 to vector<16x256xi32>
    %3 = arith.cmpi eq, %0, %2 : vector<16x256xi32>
    %c8_i32 = arith.constant 8 : i32
    %4 = vector.broadcast %c8_i32 : i32 to vector<16x256xi32>
    %5 = arith.cmpi slt, %1, %4 : vector<16x256xi32>
    %6 = arith.andi %3, %5 : vector<16x256xi1>
    %cst = arith.constant 1.000000e+00 : f32
    %cst_0 = arith.constant 0.000000e+00 : f32
    %7 = vector.broadcast %cst : f32 to vector<16x256xf32>
    %8 = vector.broadcast %cst_0 : f32 to vector<16x256xf32>
    %9 = arith.select %6, %7, %8 : vector<16x256xi1>, vector<16x256xf32>
    %c0 = arith.constant 0 : index
    %c0_1 = arith.constant 0 : index
    %c0_2 = arith.constant 0 : index
    %10 = vector.load %arg1[%c0, %c0_1, %c0_2] : memref<3x256x512xf32, #tpu.memory_space<vmem>>, vector<1x256x512xf32>
    %11 = vector.shape_cast %10 : vector<1x256x512xf32> to vector<256x512xf32>
    %cst_3 = arith.constant dense<0.000000e+00> : vector<16x512xf32>
    %12 = tpu.matmul %9, %11, %cst_3 {dimension_numbers = #tpu.dot_dimension_numbers<[1], [0], [0], [1], [0, 0, 1, 1], [], []>} : vector<16x256xf32>, vector<256x512xf32>, vector<16x512xf32> -> vector<16x512xf32>
    %13 = vector.extract_strided_slice %12 {offsets = [0, 0], sizes = [8, 256], strides = [1, 1]} : vector<16x512xf32> to vector<8x256xf32>
    %14 = vector.extract_strided_slice %12 {offsets = [8, 256], sizes = [8, 256], strides = [1, 1]} : vector<16x512xf32> to vector<8x256xf32>
    %15 = arith.subf %13, %14 : vector<8x256xf32>
    %16 = vector.extract_strided_slice %12 {offsets = [0, 256], sizes = [8, 256], strides = [1, 1]} : vector<16x512xf32> to vector<8x256xf32>
    %17 = vector.extract_strided_slice %12 {offsets = [8, 0], sizes = [8, 256], strides = [1, 1]} : vector<16x512xf32> to vector<8x256xf32>
    %18 = arith.addf %16, %17 : vector<8x256xf32>
    %19 = tpu.concatenate %15, %18 in 0 : vector<8x256xf32>, vector<8x256xf32> -> vector<16x256xf32>
    %c1 = arith.constant 1 : index
    %c0_4 = arith.constant 0 : index
    %c0_5 = arith.constant 0 : index
    %20 = vector.load %arg1[%c1, %c0_4, %c0_5] : memref<3x256x512xf32, #tpu.memory_space<vmem>>, vector<1x256x512xf32>
    %21 = vector.shape_cast %20 : vector<1x256x512xf32> to vector<256x512xf32>
    %cst_6 = arith.constant dense<0.000000e+00> : vector<16x512xf32>
    %22 = tpu.matmul %19, %21, %cst_6 {dimension_numbers = #tpu.dot_dimension_numbers<[1], [0], [0], [1], [0, 0, 1, 1], [], []>} : vector<16x256xf32>, vector<256x512xf32>, vector<16x512xf32> -> vector<16x512xf32>
    %23 = vector.extract_strided_slice %22 {offsets = [0, 0], sizes = [8, 256], strides = [1, 1]} : vector<16x512xf32> to vector<8x256xf32>
    %24 = vector.extract_strided_slice %22 {offsets = [8, 256], sizes = [8, 256], strides = [1, 1]} : vector<16x512xf32> to vector<8x256xf32>
    %25 = arith.subf %23, %24 : vector<8x256xf32>
    %26 = vector.extract_strided_slice %22 {offsets = [0, 256], sizes = [8, 256], strides = [1, 1]} : vector<16x512xf32> to vector<8x256xf32>
    %27 = vector.extract_strided_slice %22 {offsets = [8, 0], sizes = [8, 256], strides = [1, 1]} : vector<16x512xf32> to vector<8x256xf32>
    %28 = arith.addf %26, %27 : vector<8x256xf32>
    %29 = tpu.concatenate %25, %28 in 0 : vector<8x256xf32>, vector<8x256xf32> -> vector<16x256xf32>
    %c2 = arith.constant 2 : index
    %c0_7 = arith.constant 0 : index
    %c0_8 = arith.constant 0 : index
    %30 = vector.load %arg1[%c2, %c0_7, %c0_8] : memref<3x256x512xf32, #tpu.memory_space<vmem>>, vector<1x256x512xf32>
    %31 = vector.shape_cast %30 : vector<1x256x512xf32> to vector<256x512xf32>
    %cst_9 = arith.constant dense<0.000000e+00> : vector<16x512xf32>
    %32 = tpu.matmul %29, %31, %cst_9 {dimension_numbers = #tpu.dot_dimension_numbers<[1], [0], [0], [1], [0, 0, 1, 1], [], []>} : vector<16x256xf32>, vector<256x512xf32>, vector<16x512xf32> -> vector<16x512xf32>
    %33 = vector.extract_strided_slice %32 {offsets = [0, 0], sizes = [8, 256], strides = [1, 1]} : vector<16x512xf32> to vector<8x256xf32>
    %34 = vector.extract_strided_slice %32 {offsets = [8, 256], sizes = [8, 256], strides = [1, 1]} : vector<16x512xf32> to vector<8x256xf32>
    %35 = arith.subf %33, %34 : vector<8x256xf32>
    %36 = vector.extract_strided_slice %32 {offsets = [0, 256], sizes = [8, 256], strides = [1, 1]} : vector<16x512xf32> to vector<8x256xf32>
    %37 = vector.extract_strided_slice %32 {offsets = [8, 0], sizes = [8, 256], strides = [1, 1]} : vector<16x512xf32> to vector<8x256xf32>
    %38 = arith.addf %36, %37 : vector<8x256xf32>
    %39 = tpu.concatenate %35, %38 in 0 : vector<8x256xf32>, vector<8x256xf32> -> vector<16x256xf32>
    %40 = vector.extract_strided_slice %39 {offsets = [0, 0], sizes = [8, 256], strides = [1, 1]} : vector<16x256xf32> to vector<8x256xf32>
    %41 = vector.extract_strided_slice %39 {offsets = [8, 0], sizes = [8, 256], strides = [1, 1]} : vector<16x256xf32> to vector<8x256xf32>
    %42 = arith.mulf %40, %40 : vector<8x256xf32>
    %43 = arith.mulf %41, %41 : vector<8x256xf32>
    %44 = arith.addf %42, %43 : vector<8x256xf32>
    %45 = tpu.iota {dimensions = array<i32: 0>} : vector<8x256xi32>
    %46 = tpu.iota {dimensions = array<i32: 1>} : vector<8x256xi32>
    %c7_i32 = arith.constant 7 : i32
    %47 = vector.broadcast %c7_i32 : i32 to vector<8x256xi32>
    %48 = arith.subi %47, %45 : vector<8x256xi32>
    %49 = arith.shrsi %46, %48 : vector<8x256xi32>
    %c1_i32 = arith.constant 1 : i32
    %50 = vector.broadcast %c1_i32 : i32 to vector<8x256xi32>
    %51 = arith.andi %49, %50 : vector<8x256xi32>
    %c2_i32 = arith.constant 2 : i32
    %52 = vector.broadcast %c2_i32 : i32 to vector<8x256xi32>
    %53 = arith.muli %52, %51 : vector<8x256xi32>
    %c1_i32_10 = arith.constant 1 : i32
    %54 = vector.broadcast %c1_i32_10 : i32 to vector<8x256xi32>
    %55 = arith.subi %54, %53 : vector<8x256xi32>
    %56 = arith.sitofp %55 : vector<8x256xi32> to vector<8x256xf32>
    %57 = arith.mulf %44, %56 : vector<8x256xf32>
    %cst_11 = arith.constant dense<0.000000e+00> : vector<8xf32>
    %58 = vector.multi_reduction <add>, %57, %cst_11 [1] : vector<8x256xf32> to vector<8xf32>
    %59 = vector.shape_cast %58 : vector<8xf32> to vector<8x1xf32>
    %60 = math.tanh %59 : vector<8x1xf32>
    %61 = vector.shape_cast %60 : vector<8x1xf32> to vector<8x1xf32>
    %62 = vector.broadcast %61 : vector<8x1xf32> to vector<8x128xf32>
    %c0_12 = arith.constant 0 : index
    %c0_13 = arith.constant 0 : index
    %63 = vector.load %arg2[%c0_12, %c0_13] : memref<8x128xf32, #tpu.memory_space<vmem>>, vector<8x128xf32>
    tpu.vector_store %arg2[%c0_12, %c0_13], %62 {strides = array<i32>} : memref<8x128xf32, #tpu.memory_space<vmem>>, vector<8x128xf32>,
    return
  }
  func.func @transform_0(%arg0: i32) -> (i32, i32, i32) {
    %c0_i32 = arith.constant 0 : i32
    %c0_i32_0 = arith.constant 0 : i32
    %c0_i32_1 = arith.constant 0 : i32
    %c0_i32_2 = arith.constant 0 : i32
    return %c0_i32, %c0_i32_0, %c0_i32_1 : i32, i32, i32
  }
  func.func @transform_1(%arg0: i32) -> (i32, i32) {
    %c0_i32 = arith.constant 0 : i32
    %c0_i32_0 = arith.constant 0 : i32
    %c0_i32_1 = arith.constant 0 : i32
    return %c0_i32, %c0_i32_0 : i32, i32
  }
}

</mosaic_0001>

<llo_original>
// kernel: quantum_lstm_cell_forward.1
$region0: #{quantum_lstm_cell_forward.1}
  #allocation0 [shape = 'u32[]', space=smem, size = 0x4, offset = 0x4, fixed_abs, tag = 'smem constant byte address 0x4 - core index']
  #allocation1 [shape = 'u32[144,128]{1,0:T(1,128)}', space=vmem, size = 0x12000, scoped, tag = 'internal scratch']
  %s0 = inlined_call_operand.vmem [shape: f32[3,256,512], index: 0, kind: input, shape index: {}]
  %s1 = inlined_call_operand.vmem [shape: f32[8,128], index: 1, kind: output, shape index: {}]
  %s2 = sld [smem:[#allocation0]]
  $region14: #{quantum_lstm_cell_forward.1} parent=0
    _
  %s4 = ssub.s32 1, %s2
  %s5 = scalar_select 0, %s4, %s2
  // Predicated region
  $region2: #{quantum_lstm_cell_forward.1} parent=0 // pred_check
    _
  $region3: #{quantum_lstm_cell_forward.1} parent=0 // pred_check_branch
    %7 = sbr.rel (0) target = $region5
  $region4: #{quantum_lstm_cell_forward.1} parent=0 // pred_region
    _
  $region5: #{quantum_lstm_cell_forward.1} parent=0 // pred_fallthru
    _
  %v8 = vlaneseq
  %v9 = vand.u32 %v8, 127
  %v10 = vadd.s32 %v9, 128
  %v11 = vlaneseq
  %v12 = vshrl.u32 %v11, 7
  %v13 = vadd.s32 %v12, 8
  %vm14 = vcmp.eq.s32.totalorder %v9, 0
  %vm15 = vcmp.eq.s32.totalorder %v10, 0
  %vm16 = vcmp.lt.s32.totalorder %v12, 8
  %vm17 = vcmp.lt.s32.totalorder %v13, 8
  %vm18 = vmand %vm14, %vm16
  %vm19 = vmand %vm15, %vm16
  %vm20 = vmand %vm14, %vm17
  %vm21 = vmand %vm15, %vm17
  %v22 = vsel %vm18, 1.0, 0.0
  %v23 = vsel %vm19, 1.0, 0.0
  %v24 = vsel %vm20, 1.0, 0.0
  %v25 = vsel %vm21, 1.0, 0.0
  %v26 = vld [vmem:[%s0] sm:$0xff]
  %v27 = vld [vmem:[%s0 + $0x8] sm:$0xff]
  %v28 = vld [vmem:[%s0 + $0x10] sm:$0xff]
  %v29 = vld [vmem:[%s0 + $0x18] sm:$0xff]
  %v30 = vld [vmem:[%s0 + $0x20] sm:$0xff]
  %v31 = vld [vmem:[%s0 + $0x28] sm:$0xff]
  %v32 = vld [vmem:[%s0 + $0x30] sm:$0xff]
  %v33 = vld [vmem:[%s0 + $0x38] sm:$0xff]
  %v34 = vld [vmem:[%s0 + $0x40] sm:$0xff]
  %v35 = vld [vmem:[%s0 + $0x48] sm:$0xff]
  %v36 = vld [vmem:[%s0 + $0x50] sm:$0xff]
  %v37 = vld [vmem:[%s0 + $0x58] sm:$0xff]
  %v38 = vld [vmem:[%s0 + $0x60] sm:$0xff]
  %v39 = vld [vmem:[%s0 + $0x68] sm:$0xff]
  %v40 = vld [vmem:[%s0 + $0x70] sm:$0xff]
  %v41 = vld [vmem:[%s0 + $0x78] sm:$0xff]
  %v42 = vld [vmem:[%s0 + $0x80] sm:$0xff]
  %v43 = vld [vmem:[%s0 + $0x88] sm:$0xff]
  %v44 = vld [vmem:[%s0 + $0x90] sm:$0xff]
  %v45 = vld [vmem:[%s0 + $0x98] sm:$0xff]
  %v46 = vld [vmem:[%s0 + $0xa0] sm:$0xff]
  %v47 = vld [vmem:[%s0 + $0xa8] sm:$0xff]
  %v48 = vld [vmem:[%s0 + $0xb0] sm:$0xff]
  %v49 = vld [vmem:[%s0 + $0xb8] sm:$0xff]
  %v50 = vld [vmem:[%s0 + $0xc0] sm:$0xff]
  %v51 = vld [vmem:[%s0 + $0xc8] sm:$0xff]
  %v52 = vld [vmem:[%s0 + $0xd0] sm:$0xff]
  %v53 = vld [vmem:[%s0 + $0xd8] sm:$0xff]
  %v54 = vld [vmem:[%s0 + $0xe0] sm:$0xff]
  %v55 = vld [vmem:[%s0 + $0xe8] sm:$0xff]
  %v56 = vld [vmem:[%s0 + $0xf0] sm:$0xff]
  %v57 = vld [vmem:[%s0 + $0xf8] sm:$0xff]
  %v58 = vld [vmem:[%s0 + $0x100] sm:$0xff]
  %v59 = vld [vmem:[%s0 + $0x108] sm:$0xff]
  %v60 = vld [vmem:[%s0 + $0x110] sm:$0xff]
  %v61 = vld [vmem:[%s0 + $0x118] sm:$0xff]
  %v62 = vld [vmem:[%s0 + $0x120] sm:$0xff]
  %v63 = vld [vmem:[%s0 + $0x128] sm:$0xff]
  %v64 = vld [vmem:[%s0 + $0x130] sm:$0xff]
  %v65 = vld [vmem:[%s0 + $0x138] sm:$0xff]
  %v66 = vld [vmem:[%s0 + $0x140] sm:$0xff]
  %v67 = vld [vmem:[%s0 + $0x148] sm:$0xff]
  %v68 = vld [vmem:[%s0 + $0x150] sm:$0xff]
  %v69 = vld [vmem:[%s0 + $0x158] sm:$0xff]
  %v70 = vld [vmem:[%s0 + $0x160] sm:$0xff]
  %v71 = vld [vmem:[%s0 + $0x168] sm:$0xff]
  %v72 = vld [vmem:[%s0 + $0x170] sm:$0xff]
  %v73 = vld [vmem:[%s0 + $0x178] sm:$0xff]
  %v74 = vld [vmem:[%s0 + $0x180] sm:$0xff]
  %v75 = vld [vmem:[%s0 + $0x188] sm:$0xff]
  %v76 = vld [vmem:[%s0 + $0x190] sm:$0xff]
  %v77 = vld [vmem:[%s0 + $0x198] sm:$0xff]
  %v78 = vld [vmem:[%s0 + $0x1a0] sm:$0xff]
  %v79 = vld [vmem:[%s0 + $0x1a8] sm:$0xff]
  %v80 = vld [vmem:[%s0 + $0x1b0] sm:$0xff]
  %v81 = vld [vmem:[%s0 + $0x1b8] sm:$0xff]
  %v82 = vld [vmem:[%s0 + $0x1c0] sm:$0xff]
  %v83 = vld [vmem:[%s0 + $0x1c8] sm:$0xff]
  %v84 = vld [vmem:[%s0 + $0x1d0] sm:$0xff]
  %v85 = vld [vmem:[%s0 + $0x1d8] sm:$0xff]
  %v86 = vld [vmem:[%s0 + $0x1e0] sm:$0xff]
  %v87 = vld [vmem:[%s0 + $0x1e8] sm:$0xff]
  %v88 = vld [vmem:[%s0 + $0x1f0] sm:$0xff]
  %v89 = vld [vmem:[%s0 + $0x1f8] sm:$0xff]
  %v90 = vld [vmem:[%s0 + $0x200] sm:$0xff]
  %v91 = vld [vmem:[%s0 + $0x208] sm:$0xff]
  %v92 = vld [vmem:[%s0 + $0x210] sm:$0xff]
  %v93 = vld [vmem:[%s0 + $0x218] sm:$0xff]
  %v94 = vld [vmem:[%s0 + $0x220] sm:$0xff]
  %v95 = vld [vmem:[%s0 + $0x228] sm:$0xff]
  %v96 = vld [vmem:[%s0 + $0x230] sm:$0xff]
  %v97 = vld [vmem:[%s0 + $0x238] sm:$0xff]
  %v98 = vld [vmem:[%s0 + $0x240] sm:$0xff]
  %v99 = vld [vmem:[%s0 + $0x248] sm:$0xff]
  %v100 = vld [vmem:[%s0 + $0x250] sm:$0xff]
  %v101 = vld [vmem:[%s0 + $0x258] sm:$0xff]
  %v102 = vld [vmem:[%s0 + $0x260] sm:$0xff]
  %v103 = vld [vmem:[%s0 + $0x268] sm:$0xff]
  %v104 = vld [vmem:[%s0 + $0x270] sm:$0xff]
  %v105 = vld [vmem:[%s0 + $0x278] sm:$0xff]
  %v106 = vld [vmem:[%s0 + $0x280] sm:$0xff]
  %v107 = vld [vmem:[%s0 + $0x288] sm:$0xff]
  %v108 = vld [vmem:[%s0 + $0x290] sm:$0xff]
  %v109 = vld [vmem:[%s0 + $0x298] sm:$0xff]
  %v110 = vld [vmem:[%s0 + $0x2a0] sm:$0xff]
  %v111 = vld [vmem:[%s0 + $0x2a8] sm:$0xff]
  %v112 = vld [vmem:[%s0 + $0x2b0] sm:$0xff]
  %v113 = vld [vmem:[%s0 + $0x2b8] sm:$0xff]
  %v114 = vld [vmem:[%s0 + $0x2c0] sm:$0xff]
  %v115 = vld [vmem:[%s0 + $0x2c8] sm:$0xff]
  %v116 = vld [vmem:[%s0 + $0x2d0] sm:$0xff]
  %v117 = vld [vmem:[%s0 + $0x2d8] sm:$0xff]
  %v118 = vld [vmem:[%s0 + $0x2e0] sm:$0xff]
  %v119 = vld [vmem:[%s0 + $0x2e8] sm:$0xff]
  %v120 = vld [vmem:[%s0 + $0x2f0] sm:$0xff]
  %v121 = vld [vmem:[%s0 + $0x2f8] sm:$0xff]
  %v122 = vld [vmem:[%s0 + $0x300] sm:$0xff]
  %v123 = vld [vmem:[%s0 + $0x308] sm:$0xff]
  %v124 = vld [vmem:[%s0 + $0x310] sm:$0xff]
  %v125 = vld [vmem:[%s0 + $0x318] sm:$0xff]
  %v126 = vld [vmem:[%s0 + $0x320] sm:$0xff]
  %v127 = vld [vmem:[%s0 + $0x328] sm:$0xff]
  %v128 = vld [vmem:[%s0 + $0x330] sm:$0xff]
  %v129 = vld [vmem:[%s0 + $0x338] sm:$0xff]
  %v130 = vld [vmem:[%s0 + $0x340] sm:$0xff]
  %v131 = vld [vmem:[%s0 + $0x348] sm:$0xff]
  %v132 = vld [vmem:[%s0 + $0x350] sm:$0xff]
  %v133 = vld [vmem:[%s0 + $0x358] sm:$0xff]
  %v134 = vld [vmem:[%s0 + $0x360] sm:$0xff]
  %v135 = vld [vmem:[%s0 + $0x368] sm:$0xff]
  %v136 = vld [vmem:[%s0 + $0x370] sm:$0xff]
  %v137 = vld [vmem:[%s0 + $0x378] sm:$0xff]
  %v138 = vld [vmem:[%s0 + $0x380] sm:$0xff]
  %v139 = vld [vmem:[%s0 + $0x388] sm:$0xff]
  %v140 = vld [vmem:[%s0 + $0x390] sm:$0xff]
  %v141 = vld [vmem:[%s0 + $0x398] sm:$0xff]
  %v142 = vld [vmem:[%s0 + $0x3a0] sm:$0xff]
  %v143 = vld [vmem:[%s0 + $0x3a8] sm:$0xff]
  %v144 = vld [vmem:[%s0 + $0x3b0] sm:$0xff]
  %v145 = vld [vmem:[%s0 + $0x3b8] sm:$0xff]
  %v146 = vld [vmem:[%s0 + $0x3c0] sm:$0xff]
  %v147 = vld [vmem:[%s0 + $0x3c8] sm:$0xff]
  %v148 = vld [vmem:[%s0 + $0x3d0] sm:$0xff]
  %v149 = vld [vmem:[%s0 + $0x3d8] sm:$0xff]
  %v150 = vld [vmem:[%s0 + $0x3e0] sm:$0xff]
  %v151 = vld [vmem:[%s0 + $0x3e8] sm:$0xff]
  %v152 = vld [vmem:[%s0 + $0x3f0] sm:$0xff]
  %v153 = vld [vmem:[%s0 + $0x3f8] sm:$0xff]
  %154 = vmatprep.subr.mxu0 %v27
  %155 = vmatpush1.msra.mxu0 %v26
  %156 = vmatprep.subr.mxu0 %v31
  %157 = vmatpush1.msra.mxu0 %v30
  %158 = vmatprep.subr.mxu0 %v35
  %159 = vmatpush1.msra.mxu0 %v34
  %160 = vmatprep.subr.mxu0 %v39
  %161 = vmatpush1.msra.mxu0 %v38
  %162 = vmatprep.subr.mxu0 %v43
  %163 = vmatpush1.msra.mxu0 %v42
  %164 = vmatprep.subr.mxu0 %v47
  %165 = vmatpush1.msra.mxu0 %v46
  %166 = vmatprep.subr.mxu0 %v51
  %167 = vmatpush1.msra.mxu0 %v50
  %168 = vmatprep.subr.mxu0 %v55
  %169 = vmatpush1.msra.mxu0 %v54
  %170 = vmatprep.subr.mxu0 %v59
  %171 = vmatpush1.msra.mxu0 %v58
  %172 = vmatprep.subr.mxu0 %v63
  %173 = vmatpush1.msra.mxu0 %v62
  %174 = vmatprep.subr.mxu0 %v67
  %175 = vmatpush1.msra.mxu0 %v66
  %176 = vmatprep.subr.mxu0 %v71
  %177 = vmatpush1.msra.mxu0 %v70
  %178 = vmatprep.subr.mxu0 %v75
  %179 = vmatpush1.msra.mxu0 %v74
  %180 = vmatprep.subr.mxu0 %v79
  %181 = vmatpush1.msra.mxu0 %v78
  %182 = vmatprep.subr.mxu0 %v83
  %183 = vmatpush1.msra.mxu0 %v82
  %184 = vmatprep.subr.mxu0 %v87
  %185 = vmatpush1.msra.mxu0 %v86
  %186 = vmatprep.subr.mxu0 %v91
  %187 = vmatpush1.msra.mxu0 %v90
  %188 = vmatprep.subr.mxu0 %v95
  %189 = vmatpush1.msra.mxu0 %v94
  %190 = vmatprep.subr.mxu0 %v99
  %191 = vmatpush1.msra.mxu0 %v98
  %192 = vmatprep.subr.mxu0 %v103
  %193 = vmatpush1.msra.mxu0 %v102
  %194 = vmatprep.subr.mxu0 %v107
  %195 = vmatpush1.msra.mxu0 %v106
  %196 = vmatprep.subr.mxu0 %v111
  %197 = vmatpush1.msra.mxu0 %v110
  %198 = vmatprep.subr.mxu0 %v115
  %199 = vmatpush1.msra.mxu0 %v114
  %200 = vmatprep.subr.mxu0 %v119
  %201 = vmatpush1.msra.mxu0 %v118
  %202 = vmatprep.subr.mxu0 %v123
  %203 = vmatpush1.msra.mxu0 %v122
  %204 = vmatprep.subr.mxu0 %v127
  %205 = vmatpush1.msra.mxu0 %v126
  %206 = vmatprep.subr.mxu0 %v131
  %207 = vmatpush1.msra.mxu0 %v130
  %208 = vmatprep.subr.mxu0 %v135
  %209 = vmatpush1.msra.mxu0 %v134
  %210 = vmatprep.subr.mxu0 %v139
  %211 = vmatpush1.msra.mxu0 %v138
  %212 = vmatprep.subr.mxu0 %v143
  %213 = vmatpush1.msra.mxu0 %v142
  %214 = vmatprep.subr.mxu0 %v147
  %215 = vmatpush1.msra.mxu0 %v146
  %216 = vmatprep.subr.mxu0 %v151
  %217 = vmatpush1.msra.mxu0 %v150
  %218 = vmatprep.mubr.f32.mxu0 %v23
  %219 = vmatmul.mubr.f32.gmra.mrb[0].mxu0 %v22
  %v220 = vpop.f32.mrb[0].mxu0
  %v221 = vadd.f32 0.0, %v220
  %v222 = vpop.f32.mrb[0].mxu0
  %v223 = vadd.f32 0.0, %v222
  %224 = vmatprep.mubr.f32.mxu0 %v25
  %225 = vmatmul.mubr.f32.gmra.mrb[0].mxu0 %v24
  %v226 = vpop.f32.mrb[0].mxu0
  %v227 = vadd.f32 0.0, %v226
  %v228 = vpop.f32.mrb[0].mxu0
  %v229 = vadd.f32 0.0, %v228
  %230 = vdwg.mxu0
  %231 = vmatprep.subr.mxu0 %v29
  %232 = vmatpush1.msra.mxu0 %v28
  %233 = vmatprep.subr.mxu0 %v33
  %234 = vmatpush1.msra.mxu0 %v32
  %235 = vmatprep.subr.mxu0 %v37
  %236 = vmatpush1.msra.mxu0 %v36
  %237 = vmatprep.subr.mxu0 %v41
  %238 = vmatpush1.msra.mxu0 %v40
  %239 = vmatprep.subr.mxu0 %v45
  %240 = vmatpush1.msra.mxu0 %v44
  %241 = vmatprep.subr.mxu0 %v49
  %242 = vmatpush1.msra.mxu0 %v48
  %243 = vmatprep.subr.mxu0 %v53
  %244 = vmatpush1.msra.mxu0 %v52
  %245 = vmatprep.subr.mxu0 %v57
  %246 = vmatpush1.msra.mxu0 %v56
  %247 = vmatprep.subr.mxu0 %v61
  %248 = vmatpush1.msra.mxu0 %v60
  %249 = vmatprep.subr.mxu0 %v65
  %250 = vmatpush1.msra.mxu0 %v64
  %251 = vmatprep.subr.mxu0 %v69
  %252 = vmatpush1.msra.mxu0 %v68
  %253 = vmatprep.subr.mxu0 %v73
  %254 = vmatpush1.msra.mxu0 %v72
  %255 = vmatprep.subr.mxu0 %v77
  %256 = vmatpush1.msra.mxu0 %v76
  %257 = vmatprep.subr.mxu0 %v81
  %258 = vmatpush1.msra.mxu0 %v80
  %259 = vmatprep.subr.mxu0 %v85
  %260 = vmatpush1.msra.mxu0 %v84
  %261 = vmatprep.subr.mxu0 %v89
  %262 = vmatpush1.msra.mxu0 %v88
  %263 = vmatprep.subr.mxu0 %v93
  %264 = vmatpush1.msra.mxu0 %v92
  %265 = vmatprep.subr.mxu0 %v97
  %266 = vmatpush1.msra.mxu0 %v96
  %267 = vmatprep.subr.mxu0 %v101
  %268 = vmatpush1.msra.mxu0 %v100
  %269 = vmatprep.subr.mxu0 %v105
  %270 = vmatpush1.msra.mxu0 %v104
  %271 = vmatprep.subr.mxu0 %v109
  %272 = vmatpush1.msra.mxu0 %v108
  %273 = vmatprep.subr.mxu0 %v113
  %274 = vmatpush1.msra.mxu0 %v112
  %275 = vmatprep.subr.mxu0 %v117
  %276 = vmatpush1.msra.mxu0 %v116
  %277 = vmatprep.subr.mxu0 %v121
  %278 = vmatpush1.msra.mxu0 %v120
  %279 = vmatprep.subr.mxu0 %v125
  %280 = vmatpush1.msra.mxu0 %v124
  %281 = vmatprep.subr.mxu0 %v129
  %282 = vmatpush1.msra.mxu0 %v128
  %283 = vmatprep.subr.mxu0 %v133
  %284 = vmatpush1.msra.mxu0 %v132
  %285 = vmatprep.subr.mxu0 %v137
  %286 = vmatpush1.msra.mxu0 %v136
  %287 = vmatprep.subr.mxu0 %v141
  %288 = vmatpush1.msra.mxu0 %v140
  %289 = vmatprep.subr.mxu0 %v145
  %290 = vmatpush1.msra.mxu0 %v144
  %291 = vmatprep.subr.mxu0 %v149
  %292 = vmatpush1.msra.mxu0 %v148
  %293 = vmatprep.subr.mxu0 %v153
  %294 = vmatpush1.msra.mxu0 %v152
  %295 = vmatprep.mubr.f32.mxu0 %v23
  %296 = vmatmul.mubr.f32.gmra.mrb[0].mxu0 %v22
  %v297 = vpop.f32.mrb[0].mxu0
  %v298 = vadd.f32 0.0, %v297
  %v299 = vpop.f32.mrb[0].mxu0
  %v300 = vadd.f32 0.0, %v299
  %301 = vmatprep.mubr.f32.mxu0 %v25
  %302 = vmatmul.mubr.f32.gmra.mrb[0].mxu0 %v24
  %v303 = vpop.f32.mrb[0].mxu0
  %v304 = vadd.f32 0.0, %v303
  %v305 = vpop.f32.mrb[0].mxu0
  %v306 = vadd.f32 0.0, %v305
  %307 = vdwg.mxu0
  %v308 = vsub.f32 %v221, %v304
  %v309 = vsub.f32 %v223, %v306
  %v310 = vadd.f32 %v298, %v227
  %v311 = vadd.f32 %v300, %v229
  %s312 = scalar_lea.vmem %s0, 1024
  %v313 = vld [vmem:[%s312] sm:$0xff]
  %v314 = vld [vmem:[%s312 + $0x8] sm:$0xff]
  %v315 = vld [vmem:[%s312 + $0x10] sm:$0xff]
  %v316 = vld [vmem:[%s312 + $0x18] sm:$0xff]
  %v317 = vld [vmem:[%s312 + $0x20] sm:$0xff]
  %v318 = vld [vmem:[%s312 + $0x28] sm:$0xff]
  %v319 = vld [vmem:[%s312 + $0x30] sm:$0xff]
  %v320 = vld [vmem:[%s312 + $0x38] sm:$0xff]
  %v321 = vld [vmem:[%s312 + $0x40] sm:$0xff]
  %v322 = vld [vmem:[%s312 + $0x48] sm:$0xff]
  %v323 = vld [vmem:[%s312 + $0x50] sm:$0xff]
  %v324 = vld [vmem:[%s312 + $0x58] sm:$0xff]
  %v325 = vld [vmem:[%s312 + $0x60] sm:$0xff]
  %v326 = vld [vmem:[%s312 + $0x68] sm:$0xff]
  %v327 = vld [vmem:[%s312 + $0x70] sm:$0xff]
  %v328 = vld [vmem:[%s312 + $0x78] sm:$0xff]
  %v329 = vld [vmem:[%s312 + $0x80] sm:$0xff]
  %v330 = vld [vmem:[%s312 + $0x88] sm:$0xff]
  %v331 = vld [vmem:[%s312 + $0x90] sm:$0xff]
  %v332 = vld [vmem:[%s312 + $0x98] sm:$0xff]
  %v333 = vld [vmem:[%s312 + $0xa0] sm:$0xff]
  %v334 = vld [vmem:[%s312 + $0xa8] sm:$0xff]
  %v335 = vld [vmem:[%s312 + $0xb0] sm:$0xff]
  %v336 = vld [vmem:[%s312 + $0xb8] sm:$0xff]
  %v337 = vld [vmem:[%s312 + $0xc0] sm:$0xff]
  %v338 = vld [vmem:[%s312 + $0xc8] sm:$0xff]
  %v339 = vld [vmem:[%s312 + $0xd0] sm:$0xff]
  %v340 = vld [vmem:[%s312 + $0xd8] sm:$0xff]
  %v341 = vld [vmem:[%s312 + $0xe0] sm:$0xff]
  %v342 = vld [vmem:[%s312 + $0xe8] sm:$0xff]
  %v343 = vld [vmem:[%s312 + $0xf0] sm:$0xff]
  %v344 = vld [vmem:[%s312 + $0xf8] sm:$0xff]
  %v345 = vld [vmem:[%s312 + $0x100] sm:$0xff]
  %v346 = vld [vmem:[%s312 + $0x108] sm:$0xff]
  %v347 = vld [vmem:[%s312 + $0x110] sm:$0xff]
  %v348 = vld [vmem:[%s312 + $0x118] sm:$0xff]
  %v349 = vld [vmem:[%s312 + $0x120] sm:$0xff]
  %v350 = vld [vmem:[%s312 + $0x128] sm:$0xff]
  %v351 = vld [vmem:[%s312 + $0x130] sm:$0xff]
  %v352 = vld [vmem:[%s312 + $0x138] sm:$0xff]
  %v353 = vld [vmem:[%s312 + $0x140] sm:$0xff]
  %v354 = vld [vmem:[%s312 + $0x148] sm:$0xff]
  %v355 = vld [vmem:[%s312 + $0x150] sm:$0xff]
  %v356 = vld [vmem:[%s312 + $0x158] sm:$0xff]
  %v357 = vld [vmem:[%s312 + $0x160] sm:$0xff]
  %v358 = vld [vmem:[%s312 + $0x168] sm:$0xff]
  %v359 = vld [vmem:[%s312 + $0x170] sm:$0xff]
  %v360 = vld [vmem:[%s312 + $0x178] sm:$0xff]
  %v361 = vld [vmem:[%s312 + $0x180] sm:$0xff]
  %v362 = vld [vmem:[%s312 + $0x188] sm:$0xff]
  %v363 = vld [vmem:[%s312 + $0x190] sm:$0xff]
  %v364 = vld [vmem:[%s312 + $0x198] sm:$0xff]
  %v365 = vld [vmem:[%s312 + $0x1a0] sm:$0xff]
  %v366 = vld [vmem:[%s312 + $0x1a8] sm:$0xff]
  %v367 = vld [vmem:[%s312 + $0x1b0] sm:$0xff]
  %v368 = vld [vmem:[%s312 + $0x1b8] sm:$0xff]
  %v369 = vld [vmem:[%s312 + $0x1c0] sm:$0xff]
  %v370 = vld [vmem:[%s312 + $0x1c8] sm:$0xff]
  %v371 = vld [vmem:[%s312 + $0x1d0] sm:$0xff]
  %v372 = vld [vmem:[%s312 + $0x1d8] sm:$0xff]
  %v373 = vld [vmem:[%s312 + $0x1e0] sm:$0xff]
  %v374 = vld [vmem:[%s312 + $0x1e8] sm:$0xff]
  %v375 = vld [vmem:[%s312 + $0x1f0] sm:$0xff]
  %v376 = vld [vmem:[%s312 + $0x1f8] sm:$0xff]
  %v377 = vld [vmem:[%s312 + $0x200] sm:$0xff]
  %v378 = vld [vmem:[%s312 + $0x208] sm:$0xff]
  %v379 = vld [vmem:[%s312 + $0x210] sm:$0xff]
  %v380 = vld [vmem:[%s312 + $0x218] sm:$0xff]
  %v381 = vld [vmem:[%s312 + $0x220] sm:$0xff]
  %v382 = vld [vmem:[%s312 + $0x228] sm:$0xff]
  %v383 = vld [vmem:[%s312 + $0x230] sm:$0xff]
  %v384 = vld [vmem:[%s312 + $0x238] sm:$0xff]
  %v385 = vld [vmem:[%s312 + $0x240] sm:$0xff]
  %v386 = vld [vmem:[%s312 + $0x248] sm:$0xff]
  %v387 = vld [vmem:[%s312 + $0x250] sm:$0xff]
  %v388 = vld [vmem:[%s312 + $0x258] sm:$0xff]
  %v389 = vld [vmem:[%s312 + $0x260] sm:$0xff]
  %v390 = vld [vmem:[%s312 + $0x268] sm:$0xff]
  %v391 = vld [vmem:[%s312 + $0x270] sm:$0xff]
  %v392 = vld [vmem:[%s312 + $0x278] sm:$0xff]
  %v393 = vld [vmem:[%s312 + $0x280] sm:$0xff]
  %v394 = vld [vmem:[%s312 + $0x288] sm:$0xff]
  %v395 = vld [vmem:[%s312 + $0x290] sm:$0xff]
  %v396 = vld [vmem:[%s312 + $0x298] sm:$0xff]
  %v397 = vld [vmem:[%s312 + $0x2a0] sm:$0xff]
  %v398 = vld [vmem:[%s312 + $0x2a8] sm:$0xff]
  %v399 = vld [vmem:[%s312 + $0x2b0] sm:$0xff]
  %v400 = vld [vmem:[%s312 + $0x2b8] sm:$0xff]
  %v401 = vld [vmem:[%s312 + $0x2c0] sm:$0xff]
  %v402 = vld [vmem:[%s312 + $0x2c8] sm:$0xff]
  %v403 = vld [vmem:[%s312 + $0x2d0] sm:$0xff]
  %v404 = vld [vmem:[%s312 + $0x2d8] sm:$0xff]
  %v405 = vld [vmem:[%s312 + $0x2e0] sm:$0xff]
  %v406 = vld [vmem:[%s312 + $0x2e8] sm:$0xff]
  %v407 = vld [vmem:[%s312 + $0x2f0] sm:$0xff]
  %v408 = vld [vmem:[%s312 + $0x2f8] sm:$0xff]
  %v409 = vld [vmem:[%s312 + $0x300] sm:$0xff]
  %v410 = vld [vmem:[%s312 + $0x308] sm:$0xff]
  %v411 = vld [vmem:[%s312 + $0x310] sm:$0xff]
  %v412 = vld [vmem:[%s312 + $0x318] sm:$0xff]
  %v413 = vld [vmem:[%s312 + $0x320] sm:$0xff]
  %v414 = vld [vmem:[%s312 + $0x328] sm:$0xff]
  %v415 = vld [vmem:[%s312 + $0x330] sm:$0xff]
  %v416 = vld [vmem:[%s312 + $0x338] sm:$0xff]
  %v417 = vld [vmem:[%s312 + $0x340] sm:$0xff]
  %v418 = vld [vmem:[%s312 + $0x348] sm:$0xff]
  %v419 = vld [vmem:[%s312 + $0x350] sm:$0xff]
  %v420 = vld [vmem:[%s312 + $0x358] sm:$0xff]
  %v421 = vld [vmem:[%s312 + $0x360] sm:$0xff]
  %v422 = vld [vmem:[%s312 + $0x368] sm:$0xff]
  %v423 = vld [vmem:[%s312 + $0x370] sm:$0xff]
  %v424 = vld [vmem:[%s312 + $0x378] sm:$0xff]
  %v425 = vld [vmem:[%s312 + $0x380] sm:$0xff]
  %v426 = vld [vmem:[%s312 + $0x388] sm:$0xff]
  %v427 = vld [vmem:[%s312 + $0x390] sm:$0xff]
  %v428 = vld [vmem:[%s312 + $0x398] sm:$0xff]
  %v429 = vld [vmem:[%s312 + $0x3a0] sm:$0xff]
  %v430 = vld [vmem:[%s312 + $0x3a8] sm:$0xff]
  %v431 = vld [vmem:[%s312 + $0x3b0] sm:$0xff]
  %v432 = vld [vmem:[%s312 + $0x3b8] sm:$0xff]
  %v433 = vld [vmem:[%s312 + $0x3c0] sm:$0xff]
  %v434 = vld [vmem:[%s312 + $0x3c8] sm:$0xff]
  %v435 = vld [vmem:[%s312 + $0x3d0] sm:$0xff]
  %v436 = vld [vmem:[%s312 + $0x3d8] sm:$0xff]
  %v437 = vld [vmem:[%s312 + $0x3e0] sm:$0xff]
  %v438 = vld [vmem:[%s312 + $0x3e8] sm:$0xff]
  %v439 = vld [vmem:[%s312 + $0x3f0] sm:$0xff]
  %v440 = vld [vmem:[%s312 + $0x3f8] sm:$0xff]
  %441 = vmatprep.subr.mxu0 %v314
  %442 = vmatpush1.msra.mxu0 %v313
  %443 = vmatprep.subr.mxu0 %v318
  %444 = vmatpush1.msra.mxu0 %v317
  %445 = vmatprep.subr.mxu0 %v322
  %446 = vmatpush1.msra.mxu0 %v321
  %447 = vmatprep.subr.mxu0 %v326
  %448 = vmatpush1.msra.mxu0 %v325
  %449 = vmatprep.subr.mxu0 %v330
  %450 = vmatpush1.msra.mxu0 %v329
  %451 = vmatprep.subr.mxu0 %v334
  %452 = vmatpush1.msra.mxu0 %v333
  %453 = vmatprep.subr.mxu0 %v338
  %454 = vmatpush1.msra.mxu0 %v337
  %455 = vmatprep.subr.mxu0 %v342
  %456 = vmatpush1.msra.mxu0 %v341
  %457 = vmatprep.subr.mxu0 %v346
  %458 = vmatpush1.msra.mxu0 %v345
  %459 = vmatprep.subr.mxu0 %v350
  %460 = vmatpush1.msra.mxu0 %v349
  %461 = vmatprep.subr.mxu0 %v354
  %462 = vmatpush1.msra.mxu0 %v353
  %463 = vmatprep.subr.mxu0 %v358
  %464 = vmatpush1.msra.mxu0 %v357
  %465 = vmatprep.subr.mxu0 %v362
  %466 = vmatpush1.msra.mxu0 %v361
  %467 = vmatprep.subr.mxu0 %v366
  %468 = vmatpush1.msra.mxu0 %v365
  %469 = vmatprep.subr.mxu0 %v370
  %470 = vmatpush1.msra.mxu0 %v369
  %471 = vmatprep.subr.mxu0 %v374
  %472 = vmatpush1.msra.mxu0 %v373
  %473 = vmatprep.subr.mxu0 %v378
  %474 = vmatpush1.msra.mxu0 %v377
  %475 = vmatprep.subr.mxu0 %v382
  %476 = vmatpush1.msra.mxu0 %v381
  %477 = vmatprep.subr.mxu0 %v386
  %478 = vmatpush1.msra.mxu0 %v385
  %479 = vmatprep.subr.mxu0 %v390
  %480 = vmatpush1.msra.mxu0 %v389
  %481 = vmatprep.subr.mxu0 %v394
  %482 = vmatpush1.msra.mxu0 %v393
  %483 = vmatprep.subr.mxu0 %v398
  %484 = vmatpush1.msra.mxu0 %v397
  %485 = vmatprep.subr.mxu0 %v402
  %486 = vmatpush1.msra.mxu0 %v401
  %487 = vmatprep.subr.mxu0 %v406
  %488 = vmatpush1.msra.mxu0 %v405
  %489 = vmatprep.subr.mxu0 %v410
  %490 = vmatpush1.msra.mxu0 %v409
  %491 = vmatprep.subr.mxu0 %v414
  %492 = vmatpush1.msra.mxu0 %v413
  %493 = vmatprep.subr.mxu0 %v418
  %494 = vmatpush1.msra.mxu0 %v417
  %495 = vmatprep.subr.mxu0 %v422
  %496 = vmatpush1.msra.mxu0 %v421
  %497 = vmatprep.subr.mxu0 %v426
  %498 = vmatpush1.msra.mxu0 %v425
  %499 = vmatprep.subr.mxu0 %v430
  %500 = vmatpush1.msra.mxu0 %v429
  %501 = vmatprep.subr.mxu0 %v434
  %502 = vmatpush1.msra.mxu0 %v433
  %503 = vmatprep.subr.mxu0 %v438
  %504 = vmatpush1.msra.mxu0 %v437
  %505 = vmatprep.mubr.f32.mxu0 %v309
  %506 = vmatmul.mubr.f32.gmra.mrb[0].mxu0 %v308
  %v507 = vpop.f32.mrb[0].mxu0
  %v508 = vadd.f32 0.0, %v507
  %v509 = vpop.f32.mrb[0].mxu0
  %v510 = vadd.f32 0.0, %v509
  %511 = vmatprep.mubr.f32.mxu0 %v311
  %512 = vmatmul.mubr.f32.gmra.mrb[0].mxu0 %v310
  %v513 = vpop.f32.mrb[0].mxu0
  %v514 = vadd.f32 0.0, %v513
  %v515 = vpop.f32.mrb[0].mxu0
  %v516 = vadd.f32 0.0, %v515
  %517 = vdwg.mxu0
  %518 = vmatprep.subr.mxu0 %v316
  %519 = vmatpush1.msra.mxu0 %v315
  %520 = vmatprep.subr.mxu0 %v320
  %521 = vmatpush1.msra.mxu0 %v319
  %522 = vmatprep.subr.mxu0 %v324
  %523 = vmatpush1.msra.mxu0 %v323
  %524 = vmatprep.subr.mxu0 %v328
  %525 = vmatpush1.msra.mxu0 %v327
  %526 = vmatprep.subr.mxu0 %v332
  %527 = vmatpush1.msra.mxu0 %v331
  %528 = vmatprep.subr.mxu0 %v336
  %529 = vmatpush1.msra.mxu0 %v335
  %530 = vmatprep.subr.mxu0 %v340
  %531 = vmatpush1.msra.mxu0 %v339
  %532 = vmatprep.subr.mxu0 %v344
  %533 = vmatpush1.msra.mxu0 %v343
  %534 = vmatprep.subr.mxu0 %v348
  %535 = vmatpush1.msra.mxu0 %v347
  %536 = vmatprep.subr.mxu0 %v352
  %537 = vmatpush1.msra.mxu0 %v351
  %538 = vmatprep.subr.mxu0 %v356
  %539 = vmatpush1.msra.mxu0 %v355
  %540 = vmatprep.subr.mxu0 %v360
  %541 = vmatpush1.msra.mxu0 %v359
  %542 = vmatprep.subr.mxu0 %v364
  %543 = vmatpush1.msra.mxu0 %v363
  %544 = vmatprep.subr.mxu0 %v368
  %545 = vmatpush1.msra.mxu0 %v367
  %546 = vmatprep.subr.mxu0 %v372
  %547 = vmatpush1.msra.mxu0 %v371
  %548 = vmatprep.subr.mxu0 %v376
  %549 = vmatpush1.msra.mxu0 %v375
  %550 = vmatprep.subr.mxu0 %v380
  %551 = vmatpush1.msra.mxu0 %v379
  %552 = vmatprep.subr.mxu0 %v384
  %553 = vmatpush1.msra.mxu0 %v383
  %554 = vmatprep.subr.mxu0 %v388
  %555 = vmatpush1.msra.mxu0 %v387
  %556 = vmatprep.subr.mxu0 %v392
  %557 = vmatpush1.msra.mxu0 %v391
  %558 = vmatprep.subr.mxu0 %v396
  %559 = vmatpush1.msra.mxu0 %v395
  %560 = vmatprep.subr.mxu0 %v400
  %561 = vmatpush1.msra.mxu0 %v399
  %562 = vmatprep.subr.mxu0 %v404
  %563 = vmatpush1.msra.mxu0 %v403
  %564 = vmatprep.subr.mxu0 %v408
  %565 = vmatpush1.msra.mxu0 %v407
  %566 = vmatprep.subr.mxu0 %v412
  %567 = vmatpush1.msra.mxu0 %v411
  %568 = vmatprep.subr.mxu0 %v416
  %569 = vmatpush1.msra.mxu0 %v415
  %570 = vmatprep.subr.mxu0 %v420
  %571 = vmatpush1.msra.mxu0 %v419
  %572 = vmatprep.subr.mxu0 %v424
  %573 = vmatpush1.msra.mxu0 %v423
  %574 = vmatprep.subr.mxu0 %v428
  %575 = vmatpush1.msra.mxu0 %v427
  %576 = vmatprep.subr.mxu0 %v432
  %577 = vmatpush1.msra.mxu0 %v431
  %578 = vmatprep.subr.mxu0 %v436
  %579 = vmatpush1.msra.mxu0 %v435
  %580 = vmatprep.subr.mxu0 %v440
  %581 = vmatpush1.msra.mxu0 %v439
  %582 = vmatprep.mubr.f32.mxu0 %v309
  %583 = vmatmul.mubr.f32.gmra.mrb[0].mxu0 %v308
  %v584 = vpop.f32.mrb[0].mxu0
  %v585 = vadd.f32 0.0, %v584
  %v586 = vpop.f32.mrb[0].mxu0
  %v587 = vadd.f32 0.0, %v586
  %588 = vmatprep.mubr.f32.mxu0 %v311
  %589 = vmatmul.mubr.f32.gmra.mrb[0].mxu0 %v310
  %v590 = vpop.f32.mrb[0].mxu0
  %v591 = vadd.f32 0.0, %v590
  %v592 = vpop.f32.mrb[0].mxu0
  %v593 = vadd.f32 0.0, %v592
  %594 = vdwg.mxu0
  %v595 = vsub.f32 %v508, %v591
  %v596 = vsub.f32 %v510, %v593
  %v597 = vadd.f32 %v585, %v514
  %v598 = vadd.f32 %v587, %v516
  %s599 = scalar_lea.vmem %s0, 2048
  %v600 = vld [vmem:[%s599] sm:$0xff]
  %v601 = vld [vmem:[%s599 + $0x8] sm:$0xff]
  %v602 = vld [vmem:[%s599 + $0x10] sm:$0xff]
  %v603 = vld [vmem:[%s599 + $0x18] sm:$0xff]
  %v604 = vld [vmem:[%s599 + $0x20] sm:$0xff]
  %v605 = vld [vmem:[%s599 + $0x28] sm:$0xff]
  %v606 = vld [vmem:[%s599 + $0x30] sm:$0xff]
  %v607 = vld [vmem:[%s599 + $0x38] sm:$0xff]
  %v608 = vld [vmem:[%s599 + $0x40] sm:$0xff]
  %v609 = vld [vmem:[%s599 + $0x48] sm:$0xff]
  %v610 = vld [vmem:[%s599 + $0x50] sm:$0xff]
  %v611 = vld [vmem:[%s599 + $0x58] sm:$0xff]
  %v612 = vld [vmem:[%s599 + $0x60] sm:$0xff]
  %v613 = vld [vmem:[%s599 + $0x68] sm:$0xff]
  %v614 = vld [vmem:[%s599 + $0x70] sm:$0xff]
  %v615 = vld [vmem:[%s599 + $0x78] sm:$0xff]
  %v616 = vld [vmem:[%s599 + $0x80] sm:$0xff]
  %v617 = vld [vmem:[%s599 + $0x88] sm:$0xff]
  %v618 = vld [vmem:[%s599 + $0x90] sm:$0xff]
  %v619 = vld [vmem:[%s599 + $0x98] sm:$0xff]
  %v620 = vld [vmem:[%s599 + $0xa0] sm:$0xff]
  %v621 = vld [vmem:[%s599 + $0xa8] sm:$0xff]
  %v622 = vld [vmem:[%s599 + $0xb0] sm:$0xff]
  %v623 = vld [vmem:[%s599 + $0xb8] sm:$0xff]
  %v624 = vld [vmem:[%s599 + $0xc0] sm:$0xff]
  %v625 = vld [vmem:[%s599 + $0xc8] sm:$0xff]
  %v626 = vld [vmem:[%s599 + $0xd0] sm:$0xff]
  %v627 = vld [vmem:[%s599 + $0xd8] sm:$0xff]
  %v628 = vld [vmem:[%s599 + $0xe0] sm:$0xff]
  %v629 = vld [vmem:[%s599 + $0xe8] sm:$0xff]
  %v630 = vld [vmem:[%s599 + $0xf0] sm:$0xff]
  %v631 = vld [vmem:[%s599 + $0xf8] sm:$0xff]
  %v632 = vld [vmem:[%s599 + $0x100] sm:$0xff]
  %v633 = vld [vmem:[%s599 + $0x108] sm:$0xff]
  %v634 = vld [vmem:[%s599 + $0x110] sm:$0xff]
  %v635 = vld [vmem:[%s599 + $0x118] sm:$0xff]
  %v636 = vld [vmem:[%s599 + $0x120] sm:$0xff]
  %v637 = vld [vmem:[%s599 + $0x128] sm:$0xff]
  %v638 = vld [vmem:[%s599 + $0x130] sm:$0xff]
  %v639 = vld [vmem:[%s599 + $0x138] sm:$0xff]
  %v640 = vld [vmem:[%s599 + $0x140] sm:$0xff]
  %v641 = vld [vmem:[%s599 + $0x148] sm:$0xff]
  %v642 = vld [vmem:[%s599 + $0x150] sm:$0xff]
  %v643 = vld [vmem:[%s599 + $0x158] sm:$0xff]
  %v644 = vld [vmem:[%s599 + $0x160] sm:$0xff]
  %v645 = vld [vmem:[%s599 + $0x168] sm:$0xff]
  %v646 = vld [vmem:[%s599 + $0x170] sm:$0xff]
  %v647 = vld [vmem:[%s599 + $0x178] sm:$0xff]
  %v648 = vld [vmem:[%s599 + $0x180] sm:$0xff]
  %v649 = vld [vmem:[%s599 + $0x188] sm:$0xff]
  %v650 = vld [vmem:[%s599 + $0x190] sm:$0xff]
  %v651 = vld [vmem:[%s599 + $0x198] sm:$0xff]
  %v652 = vld [vmem:[%s599 + $0x1a0] sm:$0xff]
  %v653 = vld [vmem:[%s599 + $0x1a8] sm:$0xff]
  %v654 = vld [vmem:[%s599 + $0x1b0] sm:$0xff]
  %v655 = vld [vmem:[%s599 + $0x1b8] sm:$0xff]
  %v656 = vld [vmem:[%s599 + $0x1c0] sm:$0xff]
  %v657 = vld [vmem:[%s599 + $0x1c8] sm:$0xff]
  %v658 = vld [vmem:[%s599 + $0x1d0] sm:$0xff]
  %v659 = vld [vmem:[%s599 + $0x1d8] sm:$0xff]
  %v660 = vld [vmem:[%s599 + $0x1e0] sm:$0xff]
  %v661 = vld [vmem:[%s599 + $0x1e8] sm:$0xff]
  %v662 = vld [vmem:[%s599 + $0x1f0] sm:$0xff]
  %v663 = vld [vmem:[%s599 + $0x1f8] sm:$0xff]
  %v664 = vld [vmem:[%s599 + $0x200] sm:$0xff]
  %v665 = vld [vmem:[%s599 + $0x208] sm:$0xff]
  %v666 = vld [vmem:[%s599 + $0x210] sm:$0xff]
  %v667 = vld [vmem:[%s599 + $0x218] sm:$0xff]
  %v668 = vld [vmem:[%s599 + $0x220] sm:$0xff]
  %v669 = vld [vmem:[%s599 + $0x228] sm:$0xff]
  %v670 = vld [vmem:[%s599 + $0x230] sm:$0xff]
  %v671 = vld [vmem:[%s599 + $0x238] sm:$0xff]
  %v672 = vld [vmem:[%s599 + $0x240] sm:$0xff]
  %v673 = vld [vmem:[%s599 + $0x248] sm:$0xff]
  %v674 = vld [vmem:[%s599 + $0x250] sm:$0xff]
  %v675 = vld [vmem:[%s599 + $0x258] sm:$0xff]
  %v676 = vld [vmem:[%s599 + $0x260] sm:$0xff]
  %v677 = vld [vmem:[%s599 + $0x268] sm:$0xff]
  %v678 = vld [vmem:[%s599 + $0x270] sm:$0xff]
  %v679 = vld [vmem:[%s599 + $0x278] sm:$0xff]
  %v680 = vld [vmem:[%s599 + $0x280] sm:$0xff]
  %v681 = vld [vmem:[%s599 + $0x288] sm:$0xff]
  %v682 = vld [vmem:[%s599 + $0x290] sm:$0xff]
  %v683 = vld [vmem:[%s599 + $0x298] sm:$0xff]
  %v684 = vld [vmem:[%s599 + $0x2a0] sm:$0xff]
  %v685 = vld [vmem:[%s599 + $0x2a8] sm:$0xff]
  %v686 = vld [vmem:[%s599 + $0x2b0] sm:$0xff]
  %v687 = vld [vmem:[%s599 + $0x2b8] sm:$0xff]
  %v688 = vld [vmem:[%s599 + $0x2c0] sm:$0xff]
  %v689 = vld [vmem:[%s599 + $0x2c8] sm:$0xff]
  %v690 = vld [vmem:[%s599 + $0x2d0] sm:$0xff]
  %v691 = vld [vmem:[%s599 + $0x2d8] sm:$0xff]
  %v692 = vld [vmem:[%s599 + $0x2e0] sm:$0xff]
  %v693 = vld [vmem:[%s599 + $0x2e8] sm:$0xff]
  %v694 = vld [vmem:[%s599 + $0x2f0] sm:$0xff]
  %v695 = vld [vmem:[%s599 + $0x2f8] sm:$0xff]
  %v696 = vld [vmem:[%s599 + $0x300] sm:$0xff]
  %v697 = vld [vmem:[%s599 + $0x308] sm:$0xff]
  %v698 = vld [vmem:[%s599 + $0x310] sm:$0xff]
  %v699 = vld [vmem:[%s599 + $0x318] sm:$0xff]
  %v700 = vld [vmem:[%s599 + $0x320] sm:$0xff]
  %v701 = vld [vmem:[%s599 + $0x328] sm:$0xff]
  %v702 = vld [vmem:[%s599 + $0x330] sm:$0xff]
  %v703 = vld [vmem:[%s599 + $0x338] sm:$0xff]
  %v704 = vld [vmem:[%s599 + $0x340] sm:$0xff]
  %v705 = vld [vmem:[%s599 + $0x348] sm:$0xff]
  %v706 = vld [vmem:[%s599 + $0x350] sm:$0xff]
  %v707 = vld [vmem:[%s599 + $0x358] sm:$0xff]
  %v708 = vld [vmem:[%s599 + $0x360] sm:$0xff]
  %v709 = vld [vmem:[%s599 + $0x368] sm:$0xff]
  %v710 = vld [vmem:[%s599 + $0x370] sm:$0xff]
  %v711 = vld [vmem:[%s599 + $0x378] sm:$0xff]
  %v712 = vld [vmem:[%s599 + $0x380] sm:$0xff]
  %v713 = vld [vmem:[%s599 + $0x388] sm:$0xff]
  %v714 = vld [vmem:[%s599 + $0x390] sm:$0xff]
  %v715 = vld [vmem:[%s599 + $0x398] sm:$0xff]
  %v716 = vld [vmem:[%s599 + $0x3a0] sm:$0xff]
  %v717 = vld [vmem:[%s599 + $0x3a8] sm:$0xff]
  %v718 = vld [vmem:[%s599 + $0x3b0] sm:$0xff]
  %v719 = vld [vmem:[%s599 + $0x3b8] sm:$0xff]
  %v720 = vld [vmem:[%s599 + $0x3c0] sm:$0xff]
  %v721 = vld [vmem:[%s599 + $0x3c8] sm:$0xff]
  %v722 = vld [vmem:[%s599 + $0x3d0] sm:$0xff]
  %v723 = vld [vmem:[%s599 + $0x3d8] sm:$0xff]
  %v724 = vld [vmem:[%s599 + $0x3e0] sm:$0xff]
  %v725 = vld [vmem:[%s599 + $0x3e8] sm:$0xff]
  %v726 = vld [vmem:[%s599 + $0x3f0] sm:$0xff]
  %v727 = vld [vmem:[%s599 + $0x3f8] sm:$0xff]
  %728 = vmatprep.subr.mxu0 %v601
  %729 = vmatpush1.msra.mxu0 %v600
  %730 = vmatprep.subr.mxu0 %v605
  %731 = vmatpush1.msra.mxu0 %v604
  %732 = vmatprep.subr.mxu0 %v609
  %733 = vmatpush1.msra.mxu0 %v608
  %734 = vmatprep.subr.mxu0 %v613
  %735 = vmatpush1.msra.mxu0 %v612
  %736 = vmatprep.subr.mxu0 %v617
  %737 = vmatpush1.msra.mxu0 %v616
  %738 = vmatprep.subr.mxu0 %v621
  %739 = vmatpush1.msra.mxu0 %v620
  %740 = vmatprep.subr.mxu0 %v625
  %741 = vmatpush1.msra.mxu0 %v624
  %742 = vmatprep.subr.mxu0 %v629
  %743 = vmatpush1.msra.mxu0 %v628
  %744 = vmatprep.subr.mxu0 %v633
  %745 = vmatpush1.msra.mxu0 %v632
  %746 = vmatprep.subr.mxu0 %v637
  %747 = vmatpush1.msra.mxu0 %v636
  %748 = vmatprep.subr.mxu0 %v641
  %749 = vmatpush1.msra.mxu0 %v640
  %750 = vmatprep.subr.mxu0 %v645
  %751 = vmatpush1.msra.mxu0 %v644
  %752 = vmatprep.subr.mxu0 %v649
  %753 = vmatpush1.msra.mxu0 %v648
  %754 = vmatprep.subr.mxu0 %v653
  %755 = vmatpush1.msra.mxu0 %v652
  %756 = vmatprep.subr.mxu0 %v657
  %757 = vmatpush1.msra.mxu0 %v656
  %758 = vmatprep.subr.mxu0 %v661
  %759 = vmatpush1.msra.mxu0 %v660
  %760 = vmatprep.subr.mxu0 %v665
  %761 = vmatpush1.msra.mxu0 %v664
  %762 = vmatprep.subr.mxu0 %v669
  %763 = vmatpush1.msra.mxu0 %v668
  %764 = vmatprep.subr.mxu0 %v673
  %765 = vmatpush1.msra.mxu0 %v672
  %766 = vmatprep.subr.mxu0 %v677
  %767 = vmatpush1.msra.mxu0 %v676
  %768 = vmatprep.subr.mxu0 %v681
  %769 = vmatpush1.msra.mxu0 %v680
  %770 = vmatprep.subr.mxu0 %v685
  %771 = vmatpush1.msra.mxu0 %v684
  %772 = vmatprep.subr.mxu0 %v689
  %773 = vmatpush1.msra.mxu0 %v688
  %774 = vmatprep.subr.mxu0 %v693
  %775 = vmatpush1.msra.mxu0 %v692
  %776 = vmatprep.subr.mxu0 %v697
  %777 = vmatpush1.msra.mxu0 %v696
  %778 = vmatprep.subr.mxu0 %v701
  %779 = vmatpush1.msra.mxu0 %v700
  %780 = vmatprep.subr.mxu0 %v705
  %781 = vmatpush1.msra.mxu0 %v704
  %782 = vmatprep.subr.mxu0 %v709
  %783 = vmatpush1.msra.mxu0 %v708
  %784 = vmatprep.subr.mxu0 %v713
  %785 = vmatpush1.msra.mxu0 %v712
  %786 = vmatprep.subr.mxu0 %v717
  %787 = vmatpush1.msra.mxu0 %v716
  %788 = vmatprep.subr.mxu0 %v721
  %789 = vmatpush1.msra.mxu0 %v720
  %790 = vmatprep.subr.mxu0 %v725
  %791 = vmatpush1.msra.mxu0 %v724
  %792 = vmatprep.mubr.f32.mxu0 %v596
  %793 = vmatmul.mubr.f32.gmra.mrb[0].mxu0 %v595
  %v794 = vpop.f32.mrb[0].mxu0
  %v795 = vadd.f32 0.0, %v794
  %v796 = vpop.f32.mrb[0].mxu0
  %v797 = vadd.f32 0.0, %v796
  %798 = vmatprep.mubr.f32.mxu0 %v598
  %799 = vmatmul.mubr.f32.gmra.mrb[0].mxu0 %v597
  %v800 = vpop.f32.mrb[0].mxu0
  %v801 = vadd.f32 0.0, %v800
  %v802 = vpop.f32.mrb[0].mxu0
  %v803 = vadd.f32 0.0, %v802
  %804 = vdwg.mxu0
  %805 = vmatprep.subr.mxu0 %v603
  %806 = vmatpush1.msra.mxu0 %v602
  %807 = vmatprep.subr.mxu0 %v607
  %808 = vmatpush1.msra.mxu0 %v606
  %809 = vmatprep.subr.mxu0 %v611
  %810 = vmatpush1.msra.mxu0 %v610
  %811 = vmatprep.subr.mxu0 %v615
  %812 = vmatpush1.msra.mxu0 %v614
  %813 = vmatprep.subr.mxu0 %v619
  %814 = vmatpush1.msra.mxu0 %v618
  %815 = vmatprep.subr.mxu0 %v623
  %816 = vmatpush1.msra.mxu0 %v622
  %817 = vmatprep.subr.mxu0 %v627
  %818 = vmatpush1.msra.mxu0 %v626
  %819 = vmatprep.subr.mxu0 %v631
  %820 = vmatpush1.msra.mxu0 %v630
  %821 = vmatprep.subr.mxu0 %v635
  %822 = vmatpush1.msra.mxu0 %v634
  %823 = vmatprep.subr.mxu0 %v639
  %824 = vmatpush1.msra.mxu0 %v638
  %825 = vmatprep.subr.mxu0 %v643
  %826 = vmatpush1.msra.mxu0 %v642
  %827 = vmatprep.subr.mxu0 %v647
  %828 = vmatpush1.msra.mxu0 %v646
  %829 = vmatprep.subr.mxu0 %v651
  %830 = vmatpush1.msra.mxu0 %v650
  %831 = vmatprep.subr.mxu0 %v655
  %832 = vmatpush1.msra.mxu0 %v654
  %833 = vmatprep.subr.mxu0 %v659
  %834 = vmatpush1.msra.mxu0 %v658
  %835 = vmatprep.subr.mxu0 %v663
  %836 = vmatpush1.msra.mxu0 %v662
  %837 = vmatprep.subr.mxu0 %v667
  %838 = vmatpush1.msra.mxu0 %v666
  %839 = vmatprep.subr.mxu0 %v671
  %840 = vmatpush1.msra.mxu0 %v670
  %841 = vmatprep.subr.mxu0 %v675
  %842 = vmatpush1.msra.mxu0 %v674
  %843 = vmatprep.subr.mxu0 %v679
  %844 = vmatpush1.msra.mxu0 %v678
  %845 = vmatprep.subr.mxu0 %v683
  %846 = vmatpush1.msra.mxu0 %v682
  %847 = vmatprep.subr.mxu0 %v687
  %848 = vmatpush1.msra.mxu0 %v686
  %849 = vmatprep.subr.mxu0 %v691
  %850 = vmatpush1.msra.mxu0 %v690
  %851 = vmatprep.subr.mxu0 %v695
  %852 = vmatpush1.msra.mxu0 %v694
  %853 = vmatprep.subr.mxu0 %v699
  %854 = vmatpush1.msra.mxu0 %v698
  %855 = vmatprep.subr.mxu0 %v703
  %856 = vmatpush1.msra.mxu0 %v702
  %857 = vmatprep.subr.mxu0 %v707
  %858 = vmatpush1.msra.mxu0 %v706
  %859 = vmatprep.subr.mxu0 %v711
  %860 = vmatpush1.msra.mxu0 %v710
  %861 = vmatprep.subr.mxu0 %v715
  %862 = vmatpush1.msra.mxu0 %v714
  %863 = vmatprep.subr.mxu0 %v719
  %864 = vmatpush1.msra.mxu0 %v718
  %865 = vmatprep.subr.mxu0 %v723
  %866 = vmatpush1.msra.mxu0 %v722
  %867 = vmatprep.subr.mxu0 %v727
  %868 = vmatpush1.msra.mxu0 %v726
  %869 = vmatprep.mubr.f32.mxu0 %v596
  %870 = vmatmul.mubr.f32.gmra.mrb[0].mxu0 %v595
  %v871 = vpop.f32.mrb[0].mxu0
  %v872 = vadd.f32 0.0, %v871
  %v873 = vpop.f32.mrb[0].mxu0
  %v874 = vadd.f32 0.0, %v873
  %875 = vmatprep.mubr.f32.mxu0 %v598
  %876 = vmatmul.mubr.f32.gmra.mrb[0].mxu0 %v597
  %v877 = vpop.f32.mrb[0].mxu0
  %v878 = vadd.f32 0.0, %v877
  %v879 = vpop.f32.mrb[0].mxu0
  %v880 = vadd.f32 0.0, %v879
  %881 = vdwg.mxu0
  %v882 = vsub.f32 %v795, %v878
  %v883 = vsub.f32 %v797, %v880
  %v884 = vadd.f32 %v872, %v801
  %v885 = vadd.f32 %v874, %v803
  %v886 = vmul.f32 %v882, %v882
  %v887 = vmul.f32 %v883, %v883
  %v888 = vmul.f32 %v884, %v884
  %v889 = vmul.f32 %v885, %v885
  %v890 = vadd.f32 %v886, %v888
  %v891 = vadd.f32 %v887, %v889
  %v892 = vsub.s32 7, %v12
  %v893 = vshra.s32 %v9, %v892
  %v894 = vshra.s32 %v10, %v892
  %v895 = vand.u32 %v893, 1
  %v896 = vand.u32 %v894, 1
  %v897 = vmul.u32 %v895, 2
  %v898 = vmul.u32 %v896, 2
  %v899 = vsub.s32 1, %v897
  %v900 = vsub.s32 1, %v898
  %v901 = vcvt.s32.f32 %v899
  %v902 = vcvt.s32.f32 %v900
  %v903 = vmul.f32 %v890, %v901
  %v904 = vmul.f32 %v891, %v902
  %v905 = vadd.f32 %v903, %v904
  %906 = vadd.xlane.f32.xlu0 %v905
  %v907 = vpop.xlane.xlu0 %906
  %v908 = vtanh.pop %v907
  %909 = vst [vmem:[%s1] sm:$0xff] %v908
  // Predicated region
  $region6: #{quantum_lstm_cell_forward.1} parent=0 // pred_check
    _
  $region7: #{quantum_lstm_cell_forward.1} parent=0 // pred_check_branch
    %911 = sbr.rel (0) target = $region9
  $region8: #{quantum_lstm_cell_forward.1} parent=0 // pred_region
    _
  $region9: #{quantum_lstm_cell_forward.1} parent=0 // pred_fallthru
    _
  // Predicated region
  $region10: #{quantum_lstm_cell_forward.1} parent=0 // pred_check
    _
  $region11: #{quantum_lstm_cell_forward.1} parent=0 // pred_check_branch
    %913 = sbr.rel (0) target = $region13
  $region12: #{quantum_lstm_cell_forward.1} parent=0 // pred_region
    _
  $region13: #{quantum_lstm_cell_forward.1} parent=0 // pred_fallthru
    _

</llo_original>
